<compile_context>
chip_gen: v7x
topology: tpu7x:2x2x1
jax: 0.10.0
libtpu: 0.0.40
codegen_flags: <defaults>
</compile_context>

<pallas_src>
import functools

import jax
import jax.numpy as jnp
from jax.experimental import pallas as pl
from jax.experimental.pallas import tpu as pltpu

_ON_TPU = jax.default_backend() == "tpu"

# Row-tile candidates: never below the f32 sublane tile (8); wrappers pad the token
# axis to a multiple of 8 so a legal candidate always exists.
_ROW_TILE_CANDIDATES = (2048, 1024, 512, 256, 128, 64, 32, 16, 8)


def _round_up(x, m):
    return ((x + m - 1) // m) * m


@functools.lru_cache(maxsize=1)
def _vmem_budgets():
    """(scoped vmem_limit_bytes, per-step live-tile budget), sized per generation.

    v5e / v6e have 128 MiB physical VMEM -> use ~100 MiB scoped / 72 MiB tile
    budget; v7x has 64 MiB -> keep 48 MiB / 24 MiB."""
    vmem_bytes = 64 * 1024 * 1024  # conservative default (v7x-sized)
    try:
        vmem_bytes = int(pltpu.get_tpu_info().vmem_capacity_bytes)
    except Exception:
        pass
    if vmem_bytes >= 96 * 1024 * 1024:
        return 100 * 1024 * 1024, 72 * 1024 * 1024
    return 48 * 1024 * 1024, 24 * 1024 * 1024


def _approx_inv(x):
    """1/x.  On TPU: EUP approximate reciprocal (frees VALU slots) + one
    Newton-Raphson step so f32 accuracy is preserved.  Plain divide elsewhere."""
    if _ON_TPU:
        r = pl.reciprocal(x, approx=True)
        return r * (2.0 - x * r)
    return 1.0 / x


def _pick_row_tile(n_rows, bytes_per_row, budget):
    """Largest row tile (>=8) dividing n_rows whose live bytes stay under budget."""
    for tm in _ROW_TILE_CANDIDATES:
        if n_rows % tm == 0 and tm * bytes_per_row <= budget:
            return tm
    return 8 if n_rows % 8 == 0 else n_rows  # full-extent block as last resort


def _pick_col_tile(hp, budget):
    """Output-column (MXU N) tile: full width when small, else the largest of
    512/256/128 whose double-buffered bf16 weight block fits half the budget."""
    if hp <= 512:
        return hp
    for tn in (512, 256, 128):
        if hp % tn == 0 and 2 * hp * tn * 2 <= budget // 2:
            return tn
    return 128  # hp is a multiple of 128 by construction


def _lane_dense_view(t, h):
    """For pure element-wise passes, reshape so the last dim is a large multiple of
    128 (unmasked full-lane stores) when the hidden size itself is not."""
    if h % 128 == 0:
        return t, h
    total = t * h
    best = None
    for lanes in (1024, 512, 256, 128):
        if total % lanes == 0:
            rows = total // lanes
            if rows % 8 == 0:
                return rows, lanes
            if best is None:
                best = (rows, lanes)
    return best if best is not None else (t, h)


def _dropout_consts(dropout_p):
    # Integer-domain keep test: keep iff bits >= round(p * 2^32)  => P(keep) = 1-p.
    threshold = min((1 << 32) - 1, int(round(float(dropout_p) * float(1 << 32))))
    scale = 1.0 / (1.0 - float(dropout_p))  # inverted-dropout scale (p < 1 enforced)
    return threshold, scale


def _keep_mask(shape, threshold):
    """Dropout keep-mask from the on-chip PRNG (seed beforehand with prng_seed)."""
    bits = pltpu.prng_random_bits(shape)
    if bits.dtype != jnp.uint32:
        bits = pltpu.bitcast(bits, jnp.uint32)
    return bits >= jnp.uint32(threshold)


# --------------------------------------------------------------------------------
# Kernels: standalone LayerNorm + residual(+dropout)  (general-sublayer path)
# --------------------------------------------------------------------------------
def layernorm_kernel(x_ref, g_ref, b_ref, o_ref, *, eps):
    x = x_ref[...].astype(jnp.float32)                      # (tm, H)
    n = x.shape[-1]
    mean = jnp.mean(x, axis=-1, keepdims=True)
    d = x - mean
    var = jnp.sum(d * d, axis=-1, keepdims=True) * (1.0 / (n - 1))   # unbiased (n-1)
    inv = _approx_inv(jnp.sqrt(var) + eps)                            # eps on std
    o_ref[...] = (g_ref[...].astype(jnp.float32) * d * inv
                  + b_ref[...].astype(jnp.float32)).astype(o_ref.dtype)


def residual_add_kernel(x_ref, y_ref, o_ref):
    o_ref[...] = (x_ref[...].astype(jnp.float32)
                  + y_ref[...].astype(jnp.float32)).astype(o_ref.dtype)


def residual_dropout_prng_kernel(seed_ref, x_ref, y_ref, o_ref, *, threshold, scale):
    pltpu.prng_seed(seed_ref[0], pl.program_id(0))
    keep = _keep_mask(x_ref.shape, threshold)
    y = jnp.where(keep, y_ref[...].astype(jnp.float32) * scale, 0.0)
    o_ref[...] = (x_ref[...].astype(jnp.float32) + y).astype(o_ref.dtype)


def residual_dropout_bits_kernel(x_ref, y_ref, bits_ref, o_ref, *, threshold, scale):
    # Interpret/CPU fallback only (the hardware PRNG has no CPU lowering).
    keep = bits_ref[...] >= jnp.uint32(threshold)
    y = jnp.where(keep, y_ref[...].astype(jnp.float32) * scale, 0.0)
    o_ref[...] = (x_ref[...].astype(jnp.float32) + y).astype(o_ref.dtype)


# --------------------------------------------------------------------------------
# Kernel: fused LayerNorm -> bf16 MXU matmul -> dropout -> residual
# --------------------------------------------------------------------------------
def _fused_body(x_ref, g_ref, b_ref, w_ref, wb_ref, o_ref, normed_ref, *,
                eps, n_real, pad_h, tn, col_tiles, seed_ref, threshold, scale):
    i = pl.program_id(0)
    j = pl.program_id(1)

    # LayerNorm prologue: computed once per row tile (j == 0), cached as bf16 in a
    # VMEM scratch and reused for all output-column tiles.
    @pl.when(j == 0)
    def _():
        x = x_ref[...].astype(jnp.float32)                   # (tm, Hp)
        mean = jnp.sum(x, axis=-1, keepdims=True) * (1.0 / n_real)  # pads are zero
        d = x - mean
        if pad_h:
            lane = jax.lax.broadcasted_iota(jnp.int32, x.shape, x.ndim - 1)
            d = jnp.where(lane < n_real, d, 0.0)             # exclude padded lanes
        var = jnp.sum(d * d, axis=-1, keepdims=True) * (1.0 / (n_real - 1))
        inv = _approx_inv(jnp.sqrt(var) + eps)
        normed_ref[...] = (g_ref[...].astype(jnp.float32) * d * inv
                           + b_ref[...].astype(jnp.float32)).astype(normed_ref.dtype)

    # bf16 x bf16 MXU matmul, f32 accumulation: (tm, Hp) @ (Hp, tn) -> (tm, tn).
    acc = jnp.dot(normed_ref[...], w_ref[...], preferred_element_type=jnp.float32)
    acc = acc + wb_ref[...].astype(jnp.float32)

    # Dropout via the on-chip PRNG, re-seeded per (i, j) tile -> order-independent
    # and safe under megacore 'parallel' sharding of the row axis.
    if seed_ref is not None:
        pltpu.prng_seed(seed_ref[0], i, j)
        keep = _keep_mask(acc.shape, threshold)
        acc = jnp.where(keep, acc * scale, 0.0)

    # Residual epilogue from the already-resident x row tile (no second x stream).
    if col_tiles == 1:
        x_res = x_ref[...]
    else:
        off = pl.multiple_of(j * tn, tn)                     # tn is a multiple of 128
        x_res = x_ref[:, pl.ds(off, tn)]
    o_ref[...] = (x_res.astype(jnp.float32) + acc).astype(o_ref.dtype)


def _fused_nodrop_kernel(x_ref, g_ref, b_ref, w_ref, wb_ref, o_ref, normed_ref, **kw):
    _fused_body(x_ref, g_ref, b_ref, w_ref, wb_ref, o_ref, normed_ref,
                seed_ref=None, threshold=0, scale=1.0, **kw)


def _fused_drop_kernel(seed_ref, x_ref, g_ref, b_ref, w_ref, wb_ref, o_ref,
                       normed_ref, *, threshold, scale, **kw):
    _fused_body(x_ref, g_ref, b_ref, w_ref, wb_ref, o_ref, normed_ref,
                seed_ref=seed_ref, threshold=threshold, scale=scale, **kw)


# --------------------------------------------------------------------------------
# Wrappers
# --------------------------------------------------------------------------------
def layer_norm(x2d, gamma, beta, *, eps=1e-6):
    t, h = x2d.shape
    vmem_limit, budget = _vmem_budgets()
    tp = _round_up(t, 8)
    xp = jnp.pad(x2d, ((0, tp - t), (0, 0))) if tp != t else x2d
    itemsize = jnp.dtype(x2d.dtype).itemsize
    tm = _pick_row_tile(tp, 2 * 2 * h * itemsize + 3 * h * 4, budget)
    out = pl.pallas_call(
        functools.partial(layernorm_kernel, eps=eps),
        out_shape=jax.ShapeDtypeStruct((tp, h), x2d.dtype),
        grid=(tp // tm,),
        in_specs=[pl.BlockSpec((tm, h), lambda i: (i, 0)),
                  pl.BlockSpec((1, h), lambda i: (0, 0)),
                  pl.BlockSpec((1, h), lambda i: (0, 0))],
        out_specs=pl.BlockSpec((tm, h), lambda i: (i, 0)),
        compiler_params=pltpu.CompilerParams(
            dimension_semantics=("parallel",), vmem_limit_bytes=vmem_limit),
        cost_estimate=pl.CostEstimate(flops=8 * tp * h, transcendentals=tp,
                                      bytes_accessed=2 * tp * h * itemsize),
    )(xp, gamma.reshape(1, h), beta.reshape(1, h))
    return out[:t] if tp != t else out


def residual_dropout(x2d, y2d, *, dropout_p, rng_key):
    """out = x + dropout(y), element-wise, on a lane-dense 2D view."""
    if dropout_p >= 1.0:
        raise ValueError("dropout_p must be < 1.0")
    t, h = x2d.shape
    vmem_limit, budget = _vmem_budgets()
    rows, lanes = _lane_dense_view(t, h)
    xv = x2d.reshape(rows, lanes)
    yv = y2d.reshape(rows, lanes)
    rp = _round_up(rows, 8)
    if rp != rows:
        xv = jnp.pad(xv, ((0, rp - rows), (0, 0)))
        yv = jnp.pad(yv, ((0, rp - rows), (0, 0)))
    itemsize = jnp.dtype(x2d.dtype).itemsize
    cp = pltpu.CompilerParams(dimension_semantics=("parallel",),
                              vmem_limit_bytes=vmem_limit)

    if dropout_p <= 0.0:
        tm = _pick_row_tile(rp, 2 * 3 * lanes * itemsize, budget)
        out = pl.pallas_call(
            residual_add_kernel,
            out_shape=jax.ShapeDtypeStruct((rp, lanes), x2d.dtype),
            grid=(rp // tm,),
            in_specs=[pl.BlockSpec((tm, lanes), lambda i: (i, 0)),
                      pl.BlockSpec((tm, lanes), lambda i: (i, 0))],
            out_specs=pl.BlockSpec((tm, lanes), lambda i: (i, 0)),
            compiler_params=cp,
            cost_estimate=pl.CostEstimate(flops=t * h, transcendentals=0,
                                          bytes_accessed=3 * t * h * itemsize),
        )(xv, yv)
    else:
        threshold, scale = _dropout_consts(dropout_p)
        if _ON_TPU:
            # On-chip PRNG: no mask bits streamed from HBM (~25-33% less traffic).
            seed = jax.random.randint(rng_key, (1,), 0, jnp.iinfo(jnp.int32).max,
                                      dtype=jnp.int32)
            tm = _pick_row_tile(rp, 2 * 3 * lanes * itemsize + 4 * lanes, budget)
            out = pl.pallas_call(
                functools.partial(residual_dropout_prng_kernel,
                                  threshold=threshold, scale=scale),
                out_shape=jax.ShapeDtypeStruct((rp, lanes), x2d.dtype),
                grid=(rp // tm,),
                in_specs=[pl.BlockSpec(memory_space=pltpu.MemorySpace.SMEM),
                          pl.BlockSpec((tm, lanes), lambda i: (i, 0)),
                          pl.BlockSpec((tm, lanes), lambda i: (i, 0))],
                out_specs=pl.BlockSpec((tm, lanes), lambda i: (i, 0)),
                compiler_params=cp,
                cost_estimate=pl.CostEstimate(flops=3 * t * h, transcendentals=0,
                                              bytes_accessed=3 * t * h * itemsize),
            )(seed, xv, yv)
        else:
            # TODO(synk): interpret/CPU fallback only — the hardware PRNG has no
            # CPU lowering, so mask bits are drawn outside and streamed in.
            bits = jax.random.bits(rng_key, (rp, lanes), dtype=jnp.uint32)
            tm = _pick_row_tile(rp, 2 * (3 * lanes * itemsize + 4 * lanes), budget)
            out = pl.pallas_call(
                functools.partial(residual_dropout_bits_kernel,
                                  threshold=threshold, scale=scale),
                out_shape=jax.ShapeDtypeStruct((rp, lanes), x2d.dtype),
                grid=(rp // tm,),
                in_specs=[pl.BlockSpec((tm, lanes), lambda i: (i, 0)),
                          pl.BlockSpec((tm, lanes), lambda i: (i, 0)),
                          pl.BlockSpec((tm, lanes), lambda i: (i, 0))],
                out_specs=pl.BlockSpec((tm, lanes), lambda i: (i, 0)),
                compiler_params=cp,
            )(xv, yv, bits)
    out = out[:rows] if rp != rows else out
    return out.reshape(t, h)


def sublayer_connection(x, gamma, beta, sublayer_fn, *, dropout_p, rng_key, eps=1e-6):
    """General path: out = x + dropout(sublayer(LayerNorm(x))), x: [B, S, H].
    The arbitrary user `sublayer_fn` has no Pallas equivalent -> plain-JAX glue."""
    if dropout_p >= 1.0:
        raise ValueError("dropout_p must be < 1.0")
    b, s, h = x.shape
    x2d = x.reshape(b * s, h)
    normed = layer_norm(x2d, gamma, beta, eps=eps)
    y = sublayer_fn(normed.reshape(b, s, h)).reshape(b * s, h)
    out = residual_dropout(x2d, y, dropout_p=dropout_p, rng_key=rng_key)
    return out.reshape(b, s, h)


def sublayer_connection_linear(x, gamma, beta, w, w_bias, *, dropout_p, rng_key,
                               eps=1e-6):
    """Fused path for a linear sublayer: out = x + dropout(LayerNorm(x) @ w + b).
    One kernel: LN prologue (bf16 VMEM scratch), bf16 MXU matmul over column tiles,
    in-kernel dropout + residual epilogue."""
    if dropout_p >= 1.0:
        raise ValueError("dropout_p must be < 1.0")
    b, s, h = x.shape
    assert w.shape == (h, h), "sublayer must preserve the hidden size (residual add)"
    t = b * s
    x2d = x.reshape(t, h)
    itemsize = jnp.dtype(x2d.dtype).itemsize
    vmem_limit, budget = _vmem_budgets()
    with_drop = dropout_p > 0.0

    if with_drop and not _ON_TPU:
        # TODO(synk): no CPU/interpret lowering for the on-chip PRNG -> fall back to
        # the unfused general path for dropout off-TPU.
        normed = layer_norm(x2d, gamma, beta, eps=eps)
        y = jnp.dot(normed, w) + w_bias
        out = residual_dropout(x2d, y, dropout_p=dropout_p, rng_key=rng_key)
        return out.reshape(b, s, h)

    # Pad hidden to a multiple of 128 (lane-dense MXU N + unmasked stores); padded
    # gamma/beta/w/bias are zero so the padded output columns are exactly zero.
    hp = _round_up(h, 128)
    pad_h = hp - h
    # Pad tokens to a multiple of 8 (full sublanes); padded rows are sliced off.
    tp = _round_up(t, 8)
    pad_t = tp - t

    x_p = jnp.pad(x2d, ((0, pad_t), (0, pad_h))) if (pad_t or pad_h) else x2d
    gamma_p = (jnp.pad(gamma, (0, pad_h)) if pad_h else gamma).reshape(1, hp)
    beta_p = (jnp.pad(beta, (0, pad_h)) if pad_h else beta).reshape(1, hp)
    # TODO(synk): on v7x, fp8 weights would halve weight traffic again (gen-gated).
    w_p = (jnp.pad(w, ((0, pad_h), (0, pad_h))) if pad_h else w).astype(jnp.bfloat16)
    wb_p = (jnp.pad(w_bias, (0, pad_h)) if pad_h else w_bias).astype(
        jnp.float32).reshape(1, hp)

    # --- joint (tn, tm) tile selection under the per-step VMEM budget ---
    tn = _pick_col_tile(hp, budget)
    col_tiles = hp // tn
    w_bytes = 2 * hp * tn * 2                       # double-buffered bf16 weight block
    per_row = (2 * hp * itemsize                    # x row block (double-buffered)
               + 2 * tn * itemsize                  # output block (double-buffered)
               + hp * 2                             # bf16 normed scratch
               + 3 * hp * 4)                        # LN-prologue f32 temporaries
    tm = None
    for cand in _ROW_TILE_CANDIDATES:
        if tp % cand == 0 and w_bytes + cand * per_row <= budget:
            tm = cand
            break
    if tm is None:
        tm = 8                                      # tp is a multiple of 8; never tm=1
    if tp // tm < 2:                                # >=2 row tiles -> megacore split
        for cand in _ROW_TILE_CANDIDATES:
            if cand < tm and tp % cand == 0 and tp // cand >= 2:
                tm = cand
                break

    grid = (tp // tm, col_tiles)
    static = dict(eps=eps, n_real=h, pad_h=pad_h, tn=tn, col_tiles=col_tiles)

    in_specs = [
        pl.BlockSpec((tm, hp), lambda i, j: (i, 0)),   # x rows (LN + residual slice)
        pl.BlockSpec((1, hp), lambda i, j: (0, 0)),    # gamma
        pl.BlockSpec((1, hp), lambda i, j: (0, 0)),    # beta
        pl.BlockSpec((hp, tn), lambda i, j: (0, j)),   # bf16 weight columns
        pl.BlockSpec((1, tn), lambda i, j: (0, j)),    # bias columns
    ]
    operands = [x_p, gamma_p, beta_p, w_p, wb_p]

    if with_drop:
        threshold, scale = _dropout_consts(dropout_p)
        seed = jax.random.randint(rng_key, (1,), 0, jnp.iinfo(jnp.int32).max,
                                  dtype=jnp.int32)
        in_specs.insert(0, pl.BlockSpec(memory_space=pltpu.MemorySpace.SMEM))
        operands.insert(0, seed)
        kernel = functools.partial(_fused_drop_kernel, threshold=threshold,
                                   scale=scale, **static)
    else:
        kernel = functools.partial(_fused_nodrop_kernel, **static)

    cost = pl.CostEstimate(
        flops=2 * tp * hp * hp + 10 * tp * hp,
        transcendentals=tp,
        bytes_accessed=2 * tp * hp * itemsize + (tp // tm) * hp * hp * 2)

    out = pl.pallas_call(
        kernel,
        out_shape=jax.ShapeDtypeStruct((tp, hp), x.dtype),
        grid=grid,
        in_specs=in_specs,
        out_specs=pl.BlockSpec((tm, tn), lambda i, j: (i, j)),
        scratch_shapes=[pltpu.VMEM((tm, hp), jnp.bfloat16)],   # cached LN rows (bf16)
        compiler_params=pltpu.CompilerParams(
            # row-tile axis is independent (megacore-shardable); column-tile axis is
            # sequential because the LN scratch is reused across it.
            dimension_semantics=("parallel", "arbitrary"),
            vmem_limit_bytes=vmem_limit),
        cost_estimate=cost,
    )(*operands)
    out = out[:t, :h] if (pad_t or pad_h) else out
    return out.reshape(b, s, h)


# --------------------------------------------------------------------------------
# main
# --------------------------------------------------------------------------------
if __name__ == "__main__":
    B, S, H = 2, 8, 32
    key = jax.random.PRNGKey(0)
    kx, kw, kb, kd1, kd2 = jax.random.split(key, 5)

    x = jax.random.normal(kx, (B, S, H), dtype=jnp.float32)

    # LayerNorm params (torch init: a_2 = ones, b_2 = zeros)
    gamma = jnp.ones((H,), dtype=jnp.float32)
    beta = jnp.zeros((H,), dtype=jnp.float32)

    # example linear sublayer H -> H
    w = jax.random.normal(kw, (H, H), dtype=jnp.float32) * 0.05
    w_bias = jax.random.normal(kb, (H,), dtype=jnp.float32) * 0.01
    sublayer_fn = lambda a: jnp.dot(a, w) + w_bias

    # --- reference (dropout disabled -> deterministic) ---
    def ref_layernorm(a):
        mean = a.mean(-1, keepdims=True)
        d = a - mean
        std = jnp.sqrt(jnp.sum(d * d, axis=-1, keepdims=True) / (a.shape[-1] - 1))
        return gamma * d / (std + 1e-6) + beta

    ref = x + sublayer_fn(ref_layernorm(x))

    # Tolerance covers the deliberate bf16 MXU path of the fused kernel (and the
    # default-precision XLA reference dot); implementation bugs produce errors
    # orders of magnitude larger.
    TOL = 1e-2

    # general path (arbitrary sublayer callable)
    out_general = sublayer_connection(x, gamma, beta, sublayer_fn,
                                      dropout_p=0.0, rng_key=kd1)
    jax.block_until_ready(out_general)
    assert jnp.allclose(out_general, ref, atol=TOL, rtol=TOL)

    # fused path (linear sublayer)
    out_fused = sublayer_connection_linear(x, gamma, beta, w, w_bias,
                                           dropout_p=0.0, rng_key=kd1)
    jax.block_until_ready(out_fused)
    assert jnp.allclose(out_fused, ref, atol=TOL, rtol=TOL)

    # training-mode runs with active dropout (randomness checked for sanity only)
    out_drop_general = sublayer_connection(x, gamma, beta, sublayer_fn,
                                           dropout_p=0.1, rng_key=kd2)
    out_drop_fused = sublayer_connection_linear(x, gamma, beta, w, w_bias,
                                                dropout_p=0.1, rng_key=kd2)
    jax.block_until_ready((out_drop_general, out_drop_fused))
    assert out_drop_general.shape == (B, S, H)
    assert out_drop_fused.shape == (B, S, H)
    assert bool(jnp.all(jnp.isfinite(out_drop_general)))
    assert bool(jnp.all(jnp.isfinite(out_drop_fused)))

    print("KERNEL_OK")
</pallas_src>

<mosaic_0001>
module attributes {stable_mosaic.version = 11 : i64} {
  func.func @layernorm_kernel(%arg0: i32, %arg1: memref<16x32xf32, #tpu.memory_space<vmem>>, %arg2: memref<1x32xf32, #tpu.memory_space<vmem>>, %arg3: memref<1x32xf32, #tpu.memory_space<vmem>>, %arg4: memref<16x32xf32, #tpu.memory_space<vmem>>) attributes {dimension_semantics = [#tpu.dimension_semantics<parallel>], iteration_bounds = array<i64: 1>, scalar_prefetch = 0 : i64, scratch_operands = 0 : i64, tpu.core_type = #tpu.core_type<tc>, window_params = [{transform_indices = @transform_0, window_bounds = array<i64: 16, 32>}, {pipeline_mode = #tpu.pipeline_mode<synchronous>, transform_indices = @transform_1, window_bounds = array<i64: 1, 32>}, {pipeline_mode = #tpu.pipeline_mode<synchronous>, transform_indices = @transform_2, window_bounds = array<i64: 1, 32>}, {transform_indices = @transform_3, window_bounds = array<i64: 16, 32>}]} {
    %c0 = arith.constant 0 : index
    %c0_0 = arith.constant 0 : index
    %0 = vector.load %arg1[%c0, %c0_0] : memref<16x32xf32, #tpu.memory_space<vmem>>, vector<16x32xf32>
    %cst = arith.constant dense<0.000000e+00> : vector<16xf32>
    %1 = vector.multi_reduction <add>, %0, %cst [1] : vector<16x32xf32> to vector<16xf32>
    %2 = vector.shape_cast %1 : vector<16xf32> to vector<16x1xf32>
    %cst_1 = arith.constant 3.200000e+01 : f32
    %3 = vector.broadcast %cst_1 : f32 to vector<16x1xf32>
    %4 = arith.divf %2, %3 : vector<16x1xf32>
    %5 = vector.broadcast %4 : vector<16x1xf32> to vector<16x32xf32>
    %6 = arith.subf %0, %5 : vector<16x32xf32>
    %7 = arith.mulf %6, %6 : vector<16x32xf32>
    %cst_2 = arith.constant dense<0.000000e+00> : vector<16xf32>
    %8 = vector.multi_reduction <add>, %7, %cst_2 [1] : vector<16x32xf32> to vector<16xf32>
    %9 = vector.shape_cast %8 : vector<16xf32> to vector<16x1xf32>
    %cst_3 = arith.constant 0.0322580636 : f32
    %10 = vector.broadcast %cst_3 : f32 to vector<16x1xf32>
    %11 = arith.mulf %9, %10 : vector<16x1xf32>
    %12 = math.sqrt %11 : vector<16x1xf32>
    %cst_4 = arith.constant 9.99999997E-7 : f32
    %13 = vector.broadcast %cst_4 : f32 to vector<16x1xf32>
    %14 = arith.addf %12, %13 : vector<16x1xf32>
    %cst_5 = arith.constant 1.000000e+00 : f32
    %15 = vector.broadcast %cst_5 : f32 to vector<16x1xf32>
    %16 = arith.divf %15, %14 : vector<16x1xf32>
    %c0_6 = arith.constant 0 : index
    %c0_7 = arith.constant 0 : index
    %17 = vector.load %arg2[%c0_6, %c0_7] : memref<1x32xf32, #tpu.memory_space<vmem>>, vector<1x32xf32>
    %18 = vector.broadcast %17 : vector<1x32xf32> to vector<16x32xf32>
    %19 = arith.mulf %18, %6 : vector<16x32xf32>
    %20 = vector.broadcast %16 : vector<16x1xf32> to vector<16x32xf32>
    %21 = arith.mulf %19, %20 : vector<16x32xf32>
    %c0_8 = arith.constant 0 : index
    %c0_9 = arith.constant 0 : index
    %22 = vector.load %arg3[%c0_8, %c0_9] : memref<1x32xf32, #tpu.memory_space<vmem>>, vector<1x32xf32>
    %23 = vector.broadcast %22 : vector<1x32xf32> to vector<16x32xf32>
    %24 = arith.addf %21, %23 : vector<16x32xf32>
    %c0_10 = arith.constant 0 : index
    %c0_11 = arith.constant 0 : index
    %25 = vector.load %arg4[%c0_10, %c0_11] : memref<16x32xf32, #tpu.memory_space<vmem>>, vector<16x32xf32>
    tpu.vector_store %arg4[%c0_10, %c0_11], %24 {strides = array<i32>} : memref<16x32xf32, #tpu.memory_space<vmem>>, vector<16x32xf32>,
    return
  }
  func.func @transform_0(%arg0: i32) -> (i32, i32) {
    %c0_i32 = arith.constant 0 : i32
    %c0_i32_0 = arith.constant 0 : i32
    return %arg0, %c0_i32 : i32, i32
  }
  func.func @transform_1(%arg0: i32) -> (i32, i32) {
    %c0_i32 = arith.constant 0 : i32
    %c0_i32_0 = arith.constant 0 : i32
    %c0_i32_1 = arith.constant 0 : i32
    return %c0_i32, %c0_i32_0 : i32, i32
  }
  func.func @transform_2(%arg0: i32) -> (i32, i32) {
    %c0_i32 = arith.constant 0 : i32
    %c0_i32_0 = arith.constant 0 : i32
    %c0_i32_1 = arith.constant 0 : i32
    return %c0_i32, %c0_i32_0 : i32, i32
  }
  func.func @transform_3(%arg0: i32) -> (i32, i32) {
    %c0_i32 = arith.constant 0 : i32
    %c0_i32_0 = arith.constant 0 : i32
    return %arg0, %c0_i32 : i32, i32
  }
}

</mosaic_0001>

<llo_original>
// kernel: tpu_custom_call.1
$region0: #{tpu_custom_call.1}
  #allocation0 [shape = 'u32[]', space=smem, size = 0x4, offset = 0x4, fixed_abs, tag = 'smem constant byte address 0x4 - core index']
  #allocation1 [shape = 'u32[144,128]{1,0:T(1,128)}', space=vmem, size = 0x12000, scoped, tag = 'internal scratch']
  %s0 = inlined_call_operand.hbm [shape: f32[16,32], index: 0, kind: input, shape index: {}]
  %s1 = inlined_call_operand.vmem [shape: f32[1,32], index: 1, kind: input, shape index: {}]
  %s2 = inlined_call_operand.vmem [shape: f32[1,32], index: 2, kind: input, shape index: {}]
  %s3 = inlined_call_operand.hbm [shape: f32[16,32], index: 3, kind: output, shape index: {}]
  %s4 = sld [smem:[#allocation0]]
  $region26: #{tpu_custom_call.1} parent=0
    _
  %s6 = ssub.s32 1, %s4
  %s7 = scalar_select 0, %s6, %s4
  $region1: #{tpu_custom_call.1} parent=0
    #allocation2 [shape = 'u8[8192]{0}', space=vmem, size = 0x2000, scoped, tag = 'input window, operand 0, single buffered']
    #allocation3 [shape = 's32[1]{0}', space=sflag, size = 0x4, scoped, tag = 'scoped memory for tpu_custom_call.1']
    #allocation4 [shape = 's32[1]{0}', space=sflag, size = 0x4, scoped, tag = 'scoped memory for tpu_custom_call.1']
    #allocation5 [shape = 'u8[8192]{0}', space=vmem, size = 0x2000, scoped, tag = 'output window, operand 0, single buffered']
    %8 = vsyncpa [#allocation3], 0
    %9 = vsyncpa [#allocation4], 0
    // Predicated region
    $region2: #{tpu_custom_call.1} parent=1 // pred_check
      _
    $region3: #{tpu_custom_call.1} parent=1 // pred_check_branch
      %11 = sbr.rel (0) target = $region5
    $region4: #{tpu_custom_call.1} parent=1 // pred_region
      %s13 = ssub.s32 256, 256
      %14 = vsyncadd [#allocation3], %s13
      %s15 = sshll.u32 [#allocation2], 4
      %s16 = int_to_ptr.vmem [resolvable:$true] %s15
      %21 = dma.hbm_to_vmem [thread:$0]  %s0, 256, %s16, [#allocation3], 128, 128, 8
    $region5: #{tpu_custom_call.1} parent=1 // pred_fallthru
      _
    // Predicated region
    $region6: #{tpu_custom_call.1} parent=1 // pred_check
      _
    $region7: #{tpu_custom_call.1} parent=1 // pred_check_branch
      %23 = sbr.rel (0) target = $region9
    $region8: #{tpu_custom_call.1} parent=1 // pred_region
      _
    $region9: #{tpu_custom_call.1} parent=1 // pred_fallthru
      _
    // Predicated region
    $region10: #{tpu_custom_call.1} parent=1 // pred_check
      _
    $region11: #{tpu_custom_call.1} parent=1 // pred_check_branch
      %25 = sbr.rel (0) target = $region13
    $region12: #{tpu_custom_call.1} parent=1 // pred_region
      _
    $region13: #{tpu_custom_call.1} parent=1 // pred_fallthru
      _
    // Predicated region
    $region14: #{tpu_custom_call.1} parent=1 // pred_check
      _
    $region15: #{tpu_custom_call.1} parent=1 // pred_check_branch
      %27 = sbr.rel (0) target = $region17
    $region16: #{tpu_custom_call.1} parent=1 // pred_region
      %28 = dma.done [#allocation3], 256
    $region17: #{tpu_custom_call.1} parent=1 // pred_fallthru
      _
    %v29 = vld [vmem:[#allocation2] sm:$0xff]
    %v30 = vld [vmem:[#allocation2 + $0x8] sm:$0xff]
    %vm31 = vcmask 261120
    %v32 = vsel %vm31, %v29, 0.0
    %33 = vadd.xlane.f32.xlu0 %v32
    %v34 = vpop.xlane.xlu0 %33
    %v35 = vsel %vm31, %v30, 0.0
    %36 = vadd.xlane.f32.xlu0 %v35
    %v37 = vpop.xlane.xlu0 %36
    %v38 = vrcp.pop 32.0
    %v39 = vmul.f32 %v34, %v38
    %v40 = vmul.f32 %v37, %v38
    %v41 = vsub.f32 %v29, %v39
    %v42 = vsub.f32 %v30, %v40
    %v43 = vmul.f32 %v41, %v41
    %v44 = vmul.f32 %v42, %v42
    %v45 = vsel %vm31, %v43, 0.0
    %46 = vadd.xlane.f32.xlu0 %v45
    %v47 = vpop.xlane.xlu0 %46
    %v48 = vsel %vm31, %v44, 0.0
    %49 = vadd.xlane.f32.xlu0 %v48
    %v50 = vpop.xlane.xlu0 %49
    %v51 = vmul.f32 %v47, 0.032258064
    %v52 = vmul.f32 %v50, 0.032258064
    %v53 = vrsqrt.pop %v51
    %v54 = vmul.f32 %v51, %v53
    %vm55 = vcmp.eq.f32.partialorder %v51, inf
    %v56 = vsel %vm55, %v51, %v54
    %vm57 = vcmp.eq.f32.partialorder %v51, 0.0
    %v58 = vand.u32 %v51, 2147483648
    %v59 = vsel %vm57, %v58, %v56
    %v60 = vrsqrt.pop %v52
    %v61 = vmul.f32 %v52, %v60
    %vm62 = vcmp.eq.f32.partialorder %v52, inf
    %v63 = vsel %vm62, %v52, %v61
    %vm64 = vcmp.eq.f32.partialorder %v52, 0.0
    %v65 = vand.u32 %v52, 2147483648
    %v66 = vsel %vm64, %v65, %v63
    %v67 = vadd.f32 %v59, 1e-06
    %v68 = vadd.f32 %v66, 1e-06
    %v69 = vrcp.pop %v67
    %v70 = vmul.f32 1.0, %v69
    %v71 = vrcp.pop %v68
    %v72 = vmul.f32 1.0, %v71
    %v73 = vld [vmem:[%s1] sm:$0x1]
    %v75 = vlaneseq
    %v76 = vshrl.u32 %v75, 7
    %v77 = vsub.s32 0, %v76
    %v78 = vrot.slane %v73, %v77
    %v80 = vmul.f32 %v78, %v41
    %v81 = vmul.f32 %v78, %v42
    %v82 = vmul.f32 %v80, %v70
    %v83 = vmul.f32 %v81, %v72
    %v84 = vld [vmem:[%s2] sm:$0x1]
    %v86 = vlaneseq
    %v87 = vshrl.u32 %v86, 7
    %v88 = vsub.s32 0, %v87
    %v89 = vrot.slane %v84, %v88
    %v91 = vadd.f32 %v82, %v89
    %v92 = vadd.f32 %v83, %v89
    %93 = vst.msk [vmem:[#allocation5] sm:$0xff] %vm31, %v91
    %94 = vst.msk [vmem:[#allocation5 + $0x8] sm:$0xff] %vm31, %v92
    // Predicated region
    $region18: #{tpu_custom_call.1} parent=1 // pred_check
      _
    $region19: #{tpu_custom_call.1} parent=1 // pred_check_branch
      %96 = sbr.rel (0) target = $region21
    $region20: #{tpu_custom_call.1} parent=1 // pred_region
      %s98 = ssub.s32 256, 256
      %99 = vsyncadd [#allocation4], %s98
      %s100 = sshll.u32 [#allocation5], 4
      %s101 = int_to_ptr.vmem [resolvable:$true] %s100
      %106 = dma.vmem_to_hbm [thread:$0]  %s101, 256, %s3, [#allocation4], 128, 128, 8
    $region21: #{tpu_custom_call.1} parent=1 // pred_fallthru
      _
    // Predicated region
    $region22: #{tpu_custom_call.1} parent=1 // pred_check
      _
    $region23: #{tpu_custom_call.1} parent=1 // pred_check_branch
      %108 = sbr.rel (0) target = $region25
    $region24: #{tpu_custom_call.1} parent=1 // pred_region
      %109 = dma.done [#allocation4], 256
    $region25: #{tpu_custom_call.1} parent=1 // pred_fallthru
      _
    %110 = vsyncpa [#allocation3], 1
    %111 = vsyncpa [#allocation4], 1

</llo_original>
